<compile_context>
chip_gen: v7x
topology: tpu7x:2x2x1
jax: 0.10.0
libtpu: 0.0.40
codegen_flags: <defaults>
</compile_context>

<pallas_src>
import jax
import jax.numpy as jnp
from jax.experimental import pallas as pl
from jax.experimental.pallas import tpu as pltpu


def _linear_kernel(x_ref, w_ref, b_ref, o_ref):
    # x_ref: [M, 2] f32 in VMEM
    # w_ref: [4]    f32 in SMEM  -> [W[0,0], W[0,1], W[1,0], W[1,1]]
    # b_ref: [2]    f32 in SMEM  -> [b[0], b[1]]
    # o_ref: [M, 2] f32 in VMEM
    x = x_ref[...]                                                     # [M, 2]

    # Single hoisted lane mask, reused by all three selects.
    lane = jax.lax.broadcasted_iota(jnp.int32, x.shape, dimension=1)   # [M, 2]
    is_lane0 = lane == 0

    # out[:, j] = x[:, 0] * W[j, 0] + x[:, 1] * W[j, 1] + b[j]
    wa = jnp.where(is_lane0, w_ref[0], w_ref[2])   # weight applied to x[:, 0]
    wb = jnp.where(is_lane0, w_ref[1], w_ref[3])   # weight applied to x[:, 1]
    bb = jnp.where(is_lane0, b_ref[0], b_ref[1])   # bias per output lane

    x0 = x[:, 0:1]                                 # [M, 1] lane-broadcasts to [M, 2]
    x1 = x[:, 1:2]                                 # [M, 1]

    v1 = x0 * wa + x1 * wb + bb                    # pure VPU FMAs, one vreg of work
    o_ref[...] = v1.astype(o_ref.dtype)


def model_forward(x1, w1, b1):
    """v1 = x1 @ W1^T + b1  (the only live value of the PyTorch forward)."""
    # The kernel hard-codes the 2-in/2-out contraction; guard the shapes.
    assert w1.shape == (2, 2), f"kernel requires Linear(2, 2) weight, got {w1.shape}"
    assert b1.shape == (2,), f"kernel requires Linear(2, 2) bias, got {b1.shape}"
    M, _ = x1.shape

    # 1D SMEM refs: f32[4] and f32[2] pad to a handful of bytes each; the
    # ravel of a contiguous (2,2) is layout-trivial (no real wrapper op).
    w_flat = w1.reshape(-1).astype(jnp.float32)
    b_flat = b1.reshape(-1).astype(jnp.float32)

    out = pl.pallas_call(
        _linear_kernel,
        out_shape=jax.ShapeDtypeStruct((M, 2), x1.dtype),
        in_specs=[
            pl.BlockSpec(memory_space=pltpu.MemorySpace.VMEM),   # x1 (whole array)
            pl.BlockSpec(memory_space=pltpu.MemorySpace.SMEM),   # W1 raveled, 1D
            pl.BlockSpec(memory_space=pltpu.MemorySpace.SMEM),   # b1, 1D
        ],
        out_specs=pl.BlockSpec(memory_space=pltpu.MemorySpace.VMEM),
    )(x1, w_flat, b_flat)
    return out


if __name__ == "__main__":
    key = jax.random.PRNGKey(0)
    k_x, k_w1, k_b1, k_w2, k_b2 = jax.random.split(key, 5)

    M, IN, OUT = 8, 2, 2  # batch of 8 rows, Linear(2, 2)

    x1 = jax.random.normal(k_x, (M, IN), dtype=jnp.float32)
    # Deterministic "Linear(2, 2)" parameters (uniform like torch default init).
    bound = 1.0 / (IN ** 0.5)
    w1 = jax.random.uniform(k_w1, (OUT, IN), minval=-bound, maxval=bound, dtype=jnp.float32)
    b1 = jax.random.uniform(k_b1, (OUT,), minval=-bound, maxval=bound, dtype=jnp.float32)
    # w2/b2 exist in the PyTorch module but never influence the returned v1;
    # they are intentionally not fed to the kernel (dead-path elimination).
    # NOTE: this is only valid because the module returns v1, not v3.
    w2 = jax.random.uniform(k_w2, (OUT, IN), minval=-bound, maxval=bound, dtype=jnp.float32)
    b2 = jax.random.uniform(k_b2, (OUT,), minval=-bound, maxval=bound, dtype=jnp.float32)

    out = model_forward(x1, w1, b1)
    jax.block_until_ready(out)

    # Reference check (plain JAX): v1 = x1 @ W1^T + b1
    ref = x1 @ w1.T + b1
    assert jnp.allclose(out, ref, atol=1e-5, rtol=1e-5), "mismatch vs reference"

    print("KERNEL_OK")
</pallas_src>

<mosaic_0001>
module attributes {stable_mosaic.version = 11 : i64} {
  func.func @_linear_kernel(%arg0: memref<8x2xf32, #tpu.memory_space<vmem>>, %arg1: memref<4xf32, #tpu.memory_space<smem>>, %arg2: memref<2xf32, #tpu.memory_space<smem>>, %arg3: memref<8x2xf32, #tpu.memory_space<vmem>>) attributes {dimension_semantics = [], scalar_prefetch = 0 : i64, scratch_operands = 0 : i64, tpu.core_type = #tpu.core_type<tc>} {
    %c0 = arith.constant 0 : index
    %c0_0 = arith.constant 0 : index
    %0 = vector.load %arg0[%c0, %c0_0] : memref<8x2xf32, #tpu.memory_space<vmem>>, vector<8x2xf32>
    %1 = tpu.iota {dimensions = array<i32: 1>} : vector<8x2xi32>
    %c0_i32 = arith.constant 0 : i32
    %2 = vector.broadcast %c0_i32 : i32 to vector<8x2xi32>
    %3 = arith.cmpi eq, %1, %2 : vector<8x2xi32>
    %c0_1 = arith.constant 0 : index
    %4 = memref.load %arg1[%c0_1] : memref<4xf32, #tpu.memory_space<smem>>
    %c2 = arith.constant 2 : index
    %5 = memref.load %arg1[%c2] : memref<4xf32, #tpu.memory_space<smem>>
    %6 = vector.broadcast %4 : f32 to vector<8x2xf32>
    %7 = vector.broadcast %5 : f32 to vector<8x2xf32>
    %8 = arith.select %3, %6, %7 : vector<8x2xi1>, vector<8x2xf32>
    %c1 = arith.constant 1 : index
    %9 = memref.load %arg1[%c1] : memref<4xf32, #tpu.memory_space<smem>>
    %c3 = arith.constant 3 : index
    %10 = memref.load %arg1[%c3] : memref<4xf32, #tpu.memory_space<smem>>
    %11 = vector.broadcast %9 : f32 to vector<8x2xf32>
    %12 = vector.broadcast %10 : f32 to vector<8x2xf32>
    %13 = arith.select %3, %11, %12 : vector<8x2xi1>, vector<8x2xf32>
    %c0_2 = arith.constant 0 : index
    %14 = memref.load %arg2[%c0_2] : memref<2xf32, #tpu.memory_space<smem>>
    %c1_3 = arith.constant 1 : index
    %15 = memref.load %arg2[%c1_3] : memref<2xf32, #tpu.memory_space<smem>>
    %16 = vector.broadcast %14 : f32 to vector<8x2xf32>
    %17 = vector.broadcast %15 : f32 to vector<8x2xf32>
    %18 = arith.select %3, %16, %17 : vector<8x2xi1>, vector<8x2xf32>
    %19 = vector.extract_strided_slice %0 {offsets = [0, 0], sizes = [8, 1], strides = [1, 1]} : vector<8x2xf32> to vector<8x1xf32>
    %20 = vector.extract_strided_slice %0 {offsets = [0, 1], sizes = [8, 1], strides = [1, 1]} : vector<8x2xf32> to vector<8x1xf32>
    %21 = vector.broadcast %19 : vector<8x1xf32> to vector<8x2xf32>
    %22 = arith.mulf %21, %8 : vector<8x2xf32>
    %23 = vector.broadcast %20 : vector<8x1xf32> to vector<8x2xf32>
    %24 = arith.mulf %23, %13 : vector<8x2xf32>
    %25 = arith.addf %22, %24 : vector<8x2xf32>
    %26 = arith.addf %25, %18 : vector<8x2xf32>
    %c0_4 = arith.constant 0 : index
    %c0_5 = arith.constant 0 : index
    %27 = vector.load %arg3[%c0_4, %c0_5] : memref<8x2xf32, #tpu.memory_space<vmem>>, vector<8x2xf32>
    tpu.vector_store %arg3[%c0_4, %c0_5], %26 {strides = array<i32>} : memref<8x2xf32, #tpu.memory_space<vmem>>, vector<8x2xf32>,
    return
  }
}

</mosaic_0001>

<llo_original>
// kernel: tpu_custom_call.1
$region0: #{tpu_custom_call.1}
  #allocation0 [shape = 'u32[]', space=smem, size = 0x4, offset = 0x4, fixed_abs, tag = 'smem constant byte address 0x4 - core index']
  #allocation1 [shape = 'u32[144,128]{1,0:T(1,128)}', space=vmem, size = 0x12000, scoped, tag = 'internal scratch']
  %s0 = inlined_call_operand.vmem [shape: f32[8,2], index: 0, kind: input, shape index: {}]
  %s1 = inlined_call_operand.vmem [shape: f32[4], index: 1, kind: input, shape index: {}]
  %s2 = inlined_call_operand.vmem [shape: f32[2], index: 2, kind: input, shape index: {}]
  %s3 = inlined_call_operand.vmem [shape: f32[8,2], index: 3, kind: output, shape index: {}]
  %s4 = sld [smem:[#allocation0]]
  $region30: #{tpu_custom_call.1} parent=0
    _
  %s6 = ssub.s32 1, %s4
  %s7 = scalar_select 0, %s6, %s4
  $region1: #{tpu_custom_call.1} parent=0
    #allocation2 [shape = 'u8[512]{0}', space=smem, size = 0x200, scoped, tag = 'input window, operand 1, single buffered']
    #allocation3 [shape = 's32[1]{0}', space=sflag, size = 0x4, scoped, tag = 'scoped memory for tpu_custom_call.1']
    #allocation4 [shape = 'u8[512]{0}', space=smem, size = 0x200, scoped, tag = 'input window, operand 2, single buffered']
    #allocation5 [shape = 's32[1]{0}', space=sflag, size = 0x4, scoped, tag = 'scoped memory for tpu_custom_call.1']
    %8 = vsyncpa [#allocation3], 0
    %9 = vsyncpa [#allocation5], 0
    // Predicated region
    $region2: #{tpu_custom_call.1} parent=1 // pred_check
      _
    $region3: #{tpu_custom_call.1} parent=1 // pred_check_branch
      %11 = sbr.rel (0) target = $region5
    $region4: #{tpu_custom_call.1} parent=1 // pred_region
      _
    $region5: #{tpu_custom_call.1} parent=1 // pred_fallthru
      _
    // Predicated region
    $region6: #{tpu_custom_call.1} parent=1 // pred_check
      _
    $region7: #{tpu_custom_call.1} parent=1 // pred_check_branch
      %13 = sbr.rel (0) target = $region9
    $region8: #{tpu_custom_call.1} parent=1 // pred_region
      %s15 = ssub.s32 16, 16
      %16 = vsyncadd [#allocation3], %s15
      %s18 = sshll.u32 %s1, 4
      %s19 = int_to_ptr.vmem [resolvable:$true] %s18
      %21 = dma.vmem_to_smem %s19, 16, [#allocation2], [#allocation3]
    $region9: #{tpu_custom_call.1} parent=1 // pred_fallthru
      _
    // Predicated region
    $region10: #{tpu_custom_call.1} parent=1 // pred_check
      _
    $region11: #{tpu_custom_call.1} parent=1 // pred_check_branch
      %23 = sbr.rel (0) target = $region13
    $region12: #{tpu_custom_call.1} parent=1 // pred_region
      %s25 = ssub.s32 16, 16
      %26 = vsyncadd [#allocation5], %s25
      %s28 = sshll.u32 %s2, 4
      %s29 = int_to_ptr.vmem [resolvable:$true] %s28
      %31 = dma.vmem_to_smem %s29, 16, [#allocation4], [#allocation5]
    $region13: #{tpu_custom_call.1} parent=1 // pred_fallthru
      _
    // Predicated region
    $region14: #{tpu_custom_call.1} parent=1 // pred_check
      _
    $region15: #{tpu_custom_call.1} parent=1 // pred_check_branch
      %33 = sbr.rel (0) target = $region17
    $region16: #{tpu_custom_call.1} parent=1 // pred_region
      %34 = dma.done [#allocation3], 16
    $region17: #{tpu_custom_call.1} parent=1 // pred_fallthru
      _
    // Predicated region
    $region18: #{tpu_custom_call.1} parent=1 // pred_check
      _
    $region19: #{tpu_custom_call.1} parent=1 // pred_check_branch
      %36 = sbr.rel (0) target = $region21
    $region20: #{tpu_custom_call.1} parent=1 // pred_region
      %37 = dma.done [#allocation5], 16
    $region21: #{tpu_custom_call.1} parent=1 // pred_fallthru
      _
    %38 = sfence
    %v39 = vld [vmem:[%s0] sm:$0xff]
    %v40 = vlaneseq
    %v41 = vand.u32 %v40, 127
    %vm42 = vcmp.eq.s32.totalorder %v41, 0
    %s43 = sld [smem:[#allocation2]]
    %s44 = sld [smem:[#allocation2 + $0x2]]
    %v45 = vstv %s43
    %v46 = vstv %s44
    %v47 = vsel %vm42, %v45, %v46
    %s48 = sld [smem:[#allocation2 + $0x1]]
    %s49 = sld [smem:[#allocation2 + $0x3]]
    %v50 = vstv %s48
    %v51 = vstv %s49
    %v52 = vsel %vm42, %v50, %v51
    %s53 = sld [smem:[#allocation4]]
    %s54 = sld [smem:[#allocation4 + $0x1]]
    %v55 = vstv %s53
    %v56 = vstv %s54
    %v57 = vsel %vm42, %v55, %v56
    %59 = vset.pattern.permute.xlu0 0
    %60 = vperm.xlu0 %59, %v39
    %v61 = vpop.permute.xlu0 %60
    %v63 = vmul.f32 %v61, %v47
    %64 = vset.pattern.permute.xlu0 1
    %65 = vperm.xlu0 %64, %v39
    %v66 = vpop.permute.xlu0 %65
    %v68 = vmul.f32 %v66, %v52
    %v69 = vadd.f32 %v63, %v68
    %v70 = vadd.f32 %v69, %v57
    %vm71 = vcmask 15360
    %72 = vst.msk [vmem:[%s3] sm:$0xff] %vm71, %v70
    // Predicated region
    $region22: #{tpu_custom_call.1} parent=1 // pred_check
      _
    $region23: #{tpu_custom_call.1} parent=1 // pred_check_branch
      %74 = sbr.rel (0) target = $region25
    $region24: #{tpu_custom_call.1} parent=1 // pred_region
      _
    $region25: #{tpu_custom_call.1} parent=1 // pred_fallthru
      _
    // Predicated region
    $region26: #{tpu_custom_call.1} parent=1 // pred_check
      _
    $region27: #{tpu_custom_call.1} parent=1 // pred_check_branch
      %76 = sbr.rel (0) target = $region29
    $region28: #{tpu_custom_call.1} parent=1 // pred_region
      _
    $region29: #{tpu_custom_call.1} parent=1 // pred_fallthru
      _
    %77 = vsyncpa [#allocation3], 1
    %78 = vsyncpa [#allocation5], 1

</llo_original>
